<compile_context>
chip_gen: v5e
topology: v5e:2x2
jax: 0.10.0
libtpu: 0.0.40
codegen_flags: <defaults>
</compile_context>

<pallas_src>
import jax
import jax.numpy as jnp
from jax.experimental import pallas as pl
from jax.experimental.pallas import tpu as pltpu

# Problem sizes (small, TPU-tile friendly: concatenated output width = 256 lanes).
N_BRANCH = 2
B = 8          # batch
F_IN = 32      # in_features of each branch Linear
F_OUT = 128    # out_features of each branch Linear


def _parallel_bd_kernel(x_ref, w_ref, b_ref, o_ref):
    """Fused block-diagonal kernel: one MXU matmul, one bias add, one store.

    x_ref : (block_m, K_total)  bf16 VMEM  (concatenated branch inputs)
    w_ref : (K_total, N_total)  bf16 VMEM  (block-diagonal branch weights)
    b_ref : (1, N_total)        f32  VMEM  (concatenated branch biases)
    o_ref : (block_m, N_total)  f32  VMEM  (== torch.cat(outs, dim=1))
    """
    y = jnp.dot(x_ref[...], w_ref[...], preferred_element_type=jnp.float32)
    o_ref[...] = (y + b_ref[...]).astype(o_ref.dtype)


def _block_diag(ws):
    """Stack per-branch weights (F_IN_i, F_OUT_i) into one block-diagonal matrix."""
    k_total = sum(w.shape[0] for w in ws)
    n_total = sum(w.shape[1] for w in ws)
    w_bd = jnp.zeros((k_total, n_total), dtype=ws[0].dtype)
    ro, co = 0, 0
    for w in ws:
        k, n = w.shape
        w_bd = w_bd.at[ro:ro + k, co:co + n].set(w)
        ro += k
        co += n
    return w_bd


def parallel_linear(xs, ws, bs):
    """Pallas equivalent of Parallel([Linear_i]).forward(tuple(xs)).

    xs : list of (B, F_IN_i)      bf16   per-branch inputs
    ws : list of (F_IN_i, F_OUT_i) bf16  per-branch weights (transposed vs torch)
    bs : list of (F_OUT_i,)        f32   per-branch biases
    returns (B, sum(F_OUT_i)) f32  -- torch.cat along dim=1
    """
    # Wrapper-side repack (once per call, plain XLA ops; constant-folds under jit
    # when parameters are static).
    x_cat = jnp.concatenate(xs, axis=-1)                       # (B, K_total)
    w_bd = _block_diag(ws)                                     # (K_total, N_total)
    b_cat = jnp.concatenate(bs, axis=-1).reshape(1, -1)        # (1, N_total)

    b, k_total = x_cat.shape
    n_total = w_bd.shape[1]

    # Batch tiling: single step at small B; splits across cores/steps when scaled.
    block_m = b if b <= 256 else 256
    assert b % block_m == 0, "batch must be a multiple of the batch tile"
    grid = (b // block_m,)

    return pl.pallas_call(
        _parallel_bd_kernel,
        out_shape=jax.ShapeDtypeStruct((b, n_total), jnp.float32),
        grid=grid,
        in_specs=[
            pl.BlockSpec((block_m, k_total), lambda i: (i, 0)),   # x_cat
            pl.BlockSpec((k_total, n_total), lambda i: (0, 0)),   # W_bd (resident)
            pl.BlockSpec((1, n_total), lambda i: (0, 0)),         # b_cat (resident)
        ],
        out_specs=pl.BlockSpec((block_m, n_total), lambda i: (i, 0)),
        compiler_params=pltpu.CompilerParams(
            dimension_semantics=("parallel",),
        ),
    )(x_cat, w_bd, b_cat)


if __name__ == "__main__":
    key = jax.random.PRNGKey(0)
    k_x, k_w, k_b = jax.random.split(key, 3)

    # Tuple of branch inputs + per-branch Linear parameters (deterministic init).
    xs_f32 = jax.random.normal(k_x, (N_BRANCH, B, F_IN), dtype=jnp.float32)
    ws_f32 = jax.random.normal(k_w, (N_BRANCH, F_IN, F_OUT), dtype=jnp.float32) * 0.05
    bs_f32 = jax.random.normal(k_b, (N_BRANCH, F_OUT), dtype=jnp.float32) * 0.1

    # Feed the MXU bf16 inputs (f32 accumulation inside the kernel).
    xs = [xs_f32[i].astype(jnp.bfloat16) for i in range(N_BRANCH)]
    ws = [ws_f32[i].astype(jnp.bfloat16) for i in range(N_BRANCH)]
    bs = [bs_f32[i] for i in range(N_BRANCH)]

    out = jax.block_until_ready(parallel_linear(xs, ws, bs))

    # Pure-JAX reference of Parallel.forward: per-branch Linear then cat(dim=1),
    # on the same bf16-rounded operands with f32 accumulation.
    ref = jnp.concatenate(
        [
            xs[i].astype(jnp.float32) @ ws[i].astype(jnp.float32) + bs[i]
            for i in range(N_BRANCH)
        ],
        axis=1,
    )

    assert out.shape == (B, N_BRANCH * F_OUT), out.shape
    assert jnp.allclose(out, ref, atol=1e-3, rtol=1e-3), float(
        jnp.max(jnp.abs(out - ref))
    )
    print("KERNEL_OK")
</pallas_src>

<mosaic_0001>
module attributes {stable_mosaic.version = 11 : i64} {
  func.func @_parallel_bd_kernel(%arg0: i32, %arg1: memref<8x64xbf16, #tpu.memory_space<vmem>>, %arg2: memref<64x256xbf16, #tpu.memory_space<vmem>>, %arg3: memref<1x256xf32, #tpu.memory_space<vmem>>, %arg4: memref<8x256xf32, #tpu.memory_space<vmem>>) attributes {dimension_semantics = [#tpu.dimension_semantics<parallel>], iteration_bounds = array<i64: 1>, scalar_prefetch = 0 : i64, scratch_operands = 0 : i64, tpu.core_type = #tpu.core_type<tc>, window_params = [{transform_indices = @transform_0, window_bounds = array<i64: 8, 64>}, {pipeline_mode = #tpu.pipeline_mode<synchronous>, transform_indices = @transform_1, window_bounds = array<i64: 64, 256>}, {pipeline_mode = #tpu.pipeline_mode<synchronous>, transform_indices = @transform_2, window_bounds = array<i64: 1, 256>}, {transform_indices = @transform_3, window_bounds = array<i64: 8, 256>}]} {
    %c0 = arith.constant 0 : index
    %c0_0 = arith.constant 0 : index
    %0 = vector.load %arg1[%c0, %c0_0] : memref<8x64xbf16, #tpu.memory_space<vmem>>, vector<8x64xbf16>
    %c0_1 = arith.constant 0 : index
    %c0_2 = arith.constant 0 : index
    %1 = vector.load %arg2[%c0_1, %c0_2] : memref<64x256xbf16, #tpu.memory_space<vmem>>, vector<64x256xbf16>
    %cst = arith.constant dense<0.000000e+00> : vector<8x256xf32>
    %2 = tpu.matmul %0, %1, %cst {dimension_numbers = #tpu.dot_dimension_numbers<[1], [0], [0], [1], [0, 0, 1, 1], [], []>} : vector<8x64xbf16>, vector<64x256xbf16>, vector<8x256xf32> -> vector<8x256xf32>
    %c0_3 = arith.constant 0 : index
    %c0_4 = arith.constant 0 : index
    %3 = vector.load %arg3[%c0_3, %c0_4] : memref<1x256xf32, #tpu.memory_space<vmem>>, vector<1x256xf32>
    %4 = vector.broadcast %3 : vector<1x256xf32> to vector<8x256xf32>
    %5 = arith.addf %2, %4 : vector<8x256xf32>
    %c0_5 = arith.constant 0 : index
    %c0_6 = arith.constant 0 : index
    %6 = vector.load %arg4[%c0_5, %c0_6] : memref<8x256xf32, #tpu.memory_space<vmem>>, vector<8x256xf32>
    tpu.vector_store %arg4[%c0_5, %c0_6], %5 {strides = array<i32>} : memref<8x256xf32, #tpu.memory_space<vmem>>, vector<8x256xf32>,
    return
  }
  func.func @transform_0(%arg0: i32) -> (i32, i32) {
    %c0_i32 = arith.constant 0 : i32
    %c0_i32_0 = arith.constant 0 : i32
    return %arg0, %c0_i32 : i32, i32
  }
  func.func @transform_1(%arg0: i32) -> (i32, i32) {
    %c0_i32 = arith.constant 0 : i32
    %c0_i32_0 = arith.constant 0 : i32
    %c0_i32_1 = arith.constant 0 : i32
    return %c0_i32, %c0_i32_0 : i32, i32
  }
  func.func @transform_2(%arg0: i32) -> (i32, i32) {
    %c0_i32 = arith.constant 0 : i32
    %c0_i32_0 = arith.constant 0 : i32
    %c0_i32_1 = arith.constant 0 : i32
    return %c0_i32, %c0_i32_0 : i32, i32
  }
  func.func @transform_3(%arg0: i32) -> (i32, i32) {
    %c0_i32 = arith.constant 0 : i32
    %c0_i32_0 = arith.constant 0 : i32
    return %arg0, %c0_i32 : i32, i32
  }
}

</mosaic_0001>

<llo_original>
// kernel: tpu_custom_call.1
$region0: #{tpu_custom_call.1}
  #allocation0 [shape = 'u32[]', space=smem, size = 0x4, offset = 0x4, fixed_abs, tag = 'smem constant byte address 0x4 - core index']
  #allocation1 [shape = 'u32[72,128]{1,0:T(1,128)}', space=vmem, size = 0x9000, scoped, tag = 'internal scratch']
  %s0 = inlined_call_operand.hbm [shape: bf16[8,64], index: 0, kind: input, shape index: {}]
  %s1 = inlined_call_operand.hbm [shape: bf16[64,256], index: 1, kind: input, shape index: {}]
  %s2 = inlined_call_operand.hbm [shape: f32[1,256], index: 2, kind: input, shape index: {}]
  %s3 = inlined_call_operand.hbm [shape: f32[8,256], index: 3, kind: output, shape index: {}]
  %s4 = sld [smem:[#allocation0]]
  $region34: #{tpu_custom_call.1} parent=0
    _
  %s6 = ssub.s32 1, %s4
  %s7 = scalar_select 0, %s6, %s4
  $region1: #{tpu_custom_call.1} parent=0
    #allocation2 [shape = 'u8[2048]{0}', space=vmem, size = 0x800, scoped, tag = 'input window, operand 0, single buffered']
    #allocation3 [shape = 's32[1]{0}', space=sflag, size = 0x4, scoped, tag = 'scoped memory for tpu_custom_call.1']
    #allocation4 [shape = 's32[1]{0}', space=sflag, size = 0x4, scoped, tag = 'scoped memory for tpu_custom_call.1']
    #allocation5 [shape = 'u8[32768]{0}', space=vmem, size = 0x8000, scoped, tag = 'input window, operand 1, single buffered']
    #allocation6 [shape = 's32[1]{0}', space=sflag, size = 0x4, scoped, tag = 'scoped memory for tpu_custom_call.1']
    #allocation7 [shape = 'u8[1024]{0}', space=vmem, size = 0x400, scoped, tag = 'input window, operand 2, single buffered']
    #allocation8 [shape = 'u8[8192]{0}', space=vmem, size = 0x2000, scoped, tag = 'output window, operand 0, single buffered']
    %8 = vsyncpa [#allocation3], 0
    %9 = vsyncpa [#allocation6], 0
    %10 = vsyncpa [#allocation4], 0
    // Predicated region
    $region2: #{tpu_custom_call.1} parent=1 // pred_check
      _
    $region3: #{tpu_custom_call.1} parent=1 // pred_check_branch
      %12 = sbr.rel (0) target = $region5
    $region4: #{tpu_custom_call.1} parent=1 // pred_region
      %14 = vsyncadd [#allocation3], 0
      %s16 = sshll.u32 %s0, 4
      %s17 = int_to_ptr.hbm [resolvable:$true] %s16
      %s18 = sshll.u32 [#allocation2], 4
      %s19 = int_to_ptr.vmem [resolvable:$true] %s18
      %21 = dma.hbm_to_vmem [thread:$0]  %s17, 64, %s19, [#allocation3]
    $region5: #{tpu_custom_call.1} parent=1 // pred_fallthru
      _
    // Predicated region
    $region6: #{tpu_custom_call.1} parent=1 // pred_check
      _
    $region7: #{tpu_custom_call.1} parent=1 // pred_check_branch
      %23 = sbr.rel (0) target = $region9
    $region8: #{tpu_custom_call.1} parent=1 // pred_region
      %25 = vsyncadd [#allocation6], 0
      %s26 = sshll.u32 %s1, 4
      %s27 = int_to_ptr.hbm [resolvable:$true] %s26
      %s28 = sshll.u32 [#allocation5], 4
      %s29 = int_to_ptr.vmem [resolvable:$true] %s28
      %34 = dma.hbm_to_vmem [thread:$0]  %s27, 1024, %s29, [#allocation6], 128, 128, 8
    $region9: #{tpu_custom_call.1} parent=1 // pred_fallthru
      _
    // Predicated region
    $region10: #{tpu_custom_call.1} parent=1 // pred_check
      _
    $region11: #{tpu_custom_call.1} parent=1 // pred_check_branch
      %36 = sbr.rel (0) target = $region13
    $region12: #{tpu_custom_call.1} parent=1 // pred_region
      %38 = vsyncadd [#allocation6], 0
      %s40 = sshll.u32 %s2, 4
      %s41 = int_to_ptr.hbm [resolvable:$true] %s40
      %s42 = sshll.u32 [#allocation7], 4
      %s43 = int_to_ptr.vmem [resolvable:$true] %s42
      %45 = dma.hbm_to_vmem [thread:$0]  %s41, 32, %s43, [#allocation6]
    $region13: #{tpu_custom_call.1} parent=1 // pred_fallthru
      _
    // Predicated region
    $region14: #{tpu_custom_call.1} parent=1 // pred_check
      _
    $region15: #{tpu_custom_call.1} parent=1 // pred_check_branch
      %47 = sbr.rel (0) target = $region17
    $region16: #{tpu_custom_call.1} parent=1 // pred_region
      %49 = dma.done [#allocation3], 64
    $region17: #{tpu_custom_call.1} parent=1 // pred_fallthru
      _
    // Predicated region
    $region18: #{tpu_custom_call.1} parent=1 // pred_check
      _
    $region19: #{tpu_custom_call.1} parent=1 // pred_check_branch
      %51 = sbr.rel (0) target = $region21
    $region20: #{tpu_custom_call.1} parent=1 // pred_region
      %53 = dma.done [#allocation6], 1024
    $region21: #{tpu_custom_call.1} parent=1 // pred_fallthru
      _
    // Predicated region
    $region22: #{tpu_custom_call.1} parent=1 // pred_check
      _
    $region23: #{tpu_custom_call.1} parent=1 // pred_check_branch
      %55 = sbr.rel (0) target = $region25
    $region24: #{tpu_custom_call.1} parent=1 // pred_region
      %57 = dma.done [#allocation6], 32
    $region25: #{tpu_custom_call.1} parent=1 // pred_fallthru
      _
    %v59 = vld [vmem:[#allocation2] sm:$0xf]
    %v60 = vld [vmem:[#allocation5] sm:$0xff]
    %v61 = vld [vmem:[#allocation5 + $0x8] sm:$0xff]
    %v62 = vld [vmem:[#allocation5 + $0x10] sm:$0xff]
    %v63 = vld [vmem:[#allocation5 + $0x18] sm:$0xff]
    %v64 = vld [vmem:[#allocation5 + $0x20] sm:$0xff]
    %v65 = vld [vmem:[#allocation5 + $0x28] sm:$0xff]
    %v66 = vld [vmem:[#allocation5 + $0x30] sm:$0xff]
    %v67 = vld [vmem:[#allocation5 + $0x38] sm:$0xff]
    %v68 = vld [vmem:[#allocation7] sm:$0x3]
    %v70 = vperm.slane %v68, 0
    %v71 = vperm.slane %v68, 1
    %v82 = vunpack.c.l.b16 %v60
    %v83 = vunpack.c.h.b16 %v60
    %v84 = vunpack.c.l.b16 %v61
    %v85 = vunpack.c.h.b16 %v61
    %v86 = vunpack.c.l.b16 %v62
    %v87 = vunpack.c.h.b16 %v62
    %v88 = vunpack.c.l.b16 %v63
    %v89 = vunpack.c.h.b16 %v63
    %v90 = vunpack.c.l.b16 %v64
    %v91 = vunpack.c.h.b16 %v64
    %v92 = vunpack.c.l.b16 %v65
    %v93 = vunpack.c.h.b16 %v65
    %v94 = vunpack.c.l.b16 %v66
    %v95 = vunpack.c.h.b16 %v66
    %v96 = vunpack.c.l.b16 %v67
    %v97 = vunpack.c.h.b16 %v67
    %v98 = vpack.c.b16 %v84, %v82
    %v99 = vpack.c.b16 %v85, %v83
    %v100 = vpack.c.b16 %v88, %v86
    %v101 = vpack.c.b16 %v89, %v87
    %v102 = vpack.c.b16 %v92, %v90
    %v103 = vpack.c.b16 %v93, %v91
    %v104 = vpack.c.b16 %v96, %v94
    %v105 = vpack.c.b16 %v97, %v95
    %vm114 = vcmask 523264
    %v116 = vsel %vm114, %v59, 0
    %118 = vmatpush.bf16.msra.mxu0 0
    %119 = vmatpush.bf16.msra.mxu0 0
    %120 = vmatpush.bf16.msra.mxu0 0
    %121 = vmatpush.bf16.msra.mxu0 0
    %122 = vmatpush.bf16.msra.mxu0 %v104
    %123 = vmatpush.bf16.msra.mxu0 %v102
    %124 = vmatpush.bf16.msra.mxu0 %v100
    %125 = vmatpush.bf16.msra.mxu0 %v98
    %126 = vmatmul.bf16.gmra.mxu0 %v116
    %v127 = vpop.f32.mrf.mxu0
    %v128 = vadd.f32 %v70, %v127
    %v129 = vpop.f32.mrf.mxu0
    %130 = vdwg.mxu0
    %131 = vmatpush.bf16.msra.mxu0 0
    %132 = vmatpush.bf16.msra.mxu0 0
    %133 = vmatpush.bf16.msra.mxu0 0
    %134 = vmatpush.bf16.msra.mxu0 0
    %135 = vmatpush.bf16.msra.mxu0 %v105
    %136 = vmatpush.bf16.msra.mxu0 %v103
    %137 = vmatpush.bf16.msra.mxu0 %v101
    %138 = vmatpush.bf16.msra.mxu0 %v99
    %139 = vmatmul.bf16.gmra.mxu0 %v116
    %v140 = vpop.f32.mrf.mxu0
    %v141 = vadd.f32 %v71, %v140
    %v142 = vpop.f32.mrf.mxu0
    %143 = vdwg.mxu0
    %144 = vst [vmem:[#allocation8] sm:$0xff] %v128
    %145 = vst [vmem:[#allocation8 + $0x8] sm:$0xff] %v141
    // Predicated region
    $region26: #{tpu_custom_call.1} parent=1 // pred_check
      _
    $region27: #{tpu_custom_call.1} parent=1 // pred_check_branch
      %147 = sbr.rel (0) target = $region29
    $region28: #{tpu_custom_call.1} parent=1 // pred_region
      %149 = vsyncadd [#allocation4], 0
      %s151 = sshll.u32 [#allocation8], 4
      %s152 = int_to_ptr.vmem [resolvable:$true] %s151
      %s153 = sshll.u32 %s3, 4
      %s154 = int_to_ptr.hbm [resolvable:$true] %s153
      %156 = dma.vmem_to_hbm [thread:$0]  %s152, 256, %s154, [#allocation4]
    $region29: #{tpu_custom_call.1} parent=1 // pred_fallthru
      _
    // Predicated region
    $region30: #{tpu_custom_call.1} parent=1 // pred_check
      _
    $region31: #{tpu_custom_call.1} parent=1 // pred_check_branch
      %158 = sbr.rel (0) target = $region33
    $region32: #{tpu_custom_call.1} parent=1 // pred_region
      %160 = dma.done [#allocation4], 256
    $region33: #{tpu_custom_call.1} parent=1 // pred_fallthru
      _
    %161 = vsyncpa [#allocation3], 1
    %162 = vsyncpa [#allocation6], 1
    %163 = vsyncpa [#allocation4], 1

</llo_original>
